<compile_context>
chip_gen: v7x
topology: tpu7x:2x2x1
jax: 0.10.0
libtpu: 0.0.40
codegen_flags: <defaults>
</compile_context>

<pallas_src>
import jax
import jax.numpy as jnp
from jax.experimental import pallas as pl
from jax.experimental.pallas import tpu as pltpu

IN_FEATURES = 28 * 28
HIDDEN_1 = 100
HIDDEN_2 = 100
OUT_FEATURES = 8

PAD_H1 = 128
PAD_H2 = 128
PAD_OUT = 128


def _round_up(a, b):
    return (a + b - 1) // b * b


# ---------------------------------------------------------------------------
# Reference (faithful PyTorch semantics, pure JAX)
# ---------------------------------------------------------------------------
def _activation_quant(x):
    scale = 127.0 / jnp.maximum(
        jnp.max(jnp.abs(x), axis=-1, keepdims=True), 1e-5
    )
    return jnp.clip(jnp.round(x * scale), -128.0, 127.0) / scale


def _weight_quant(w):
    scale = 1.0 / jnp.maximum(jnp.mean(jnp.abs(w)), 1e-5)
    return jnp.clip(jnp.round(w * scale), -1.0, 1.0) / scale


def verysimplenet_reference(x, w1, w2, w3):
    x2d = x.reshape(-1, IN_FEATURES)

    def bitlinear(h, w):
        return jnp.dot(_activation_quant(h), _weight_quant(w).T,
                       preferred_element_type=jnp.float32)

    h1 = jnp.maximum(bitlinear(x2d, w1), 0.0)
    h2 = jnp.maximum(bitlinear(h1, w2), 0.0)
    return bitlinear(h2, w3)


# ---------------------------------------------------------------------------
# Pallas kernel
# ---------------------------------------------------------------------------
def verysimplenet_kernel(wscale_ref, x_ref, w1_ref, w2_ref, w3_ref, o_ref):
    def quant_rows(h):
        # Per-row abs-max quantization to integers in [-128, 127].
        # XLU handles the cross-lane max; the divide is only (TM, 1) wide.
        m = jnp.maximum(jnp.max(jnp.abs(h), axis=-1, keepdims=True), 1e-5)
        scale = 127.0 / m                                  # (TM, 1)
        q = jnp.clip(jnp.round(h * scale), -128.0, 127.0)
        # row_inv == 1/scale == m/127 (dequant factor applied post-matmul)
        return q.astype(jnp.bfloat16), m * (1.0 / 127.0)

    def bitlinear(h, w_ref, w_scale):
        q, row_inv = quant_rows(h)
        # bf16 integer operands -> MXU fast path, exact f32 accumulation.
        acc = jnp.dot(q, w_ref[...], preferred_element_type=jnp.float32)
        return acc * (row_inv * w_scale)                   # (TM,1) * scalar, then bcast

    x = x_ref[...]                                             # (TM, 784) f32
    h1 = jnp.maximum(bitlinear(x, w1_ref, wscale_ref[0]), 0.0)   # (TM, 128)
    h2 = jnp.maximum(bitlinear(h1, w2_ref, wscale_ref[1]), 0.0)  # (TM, 128)
    o_ref[...] = bitlinear(h2, w3_ref, wscale_ref[2])            # (TM, 128)


def _prep_weight(w, pad_in, pad_out):
    """Quantize (PyTorch (out,in) layout) -> ternary bf16, transposed to (in,out),
    zero-padded to (pad_in, pad_out).  Scale computed on the UNPADDED weight."""
    inv_scale = jnp.maximum(jnp.mean(jnp.abs(w)), 1e-5)      # == 1/scale
    scale = 1.0 / inv_scale
    q = jnp.clip(jnp.round(w * scale), -1.0, 1.0)            # ternary, (out, in)
    q_t = q.T.astype(jnp.bfloat16)                           # (in, out)
    out_f, in_f = w.shape
    q_t = jnp.pad(q_t, ((0, pad_in - in_f), (0, pad_out - out_f)))
    return q_t, inv_scale.astype(jnp.float32)


def verysimplenet_forward(x, w1, w2, w3, tm=1024):
    # Flatten like x.view(-1, 28*28)
    x2d = x.reshape(-1, IN_FEATURES).astype(jnp.float32)
    n = x2d.shape[0]

    # Hoisted weight quant + transpose + lane padding (one-time XLA work).
    wq1, s1 = _prep_weight(w1, IN_FEATURES, PAD_H1)
    wq2, s2 = _prep_weight(w2, PAD_H1, PAD_H2)
    wq3, s3 = _prep_weight(w3, PAD_H2, PAD_OUT)
    wscales = jnp.stack([s1, s2, s3])

    # Batch tile: multiple of 8 sublanes; clamp for small batches.  At tm=1024 the
    # double-buffered x tile is ~6.4 MiB f32 — comfortably inside scoped VMEM on
    # all of v5e/v6e/v7x.
    tm = min(tm, _round_up(n, 8))
    n_pad = _round_up(n, tm)
    if n_pad != n:
        x2d = jnp.pad(x2d, ((0, n_pad - n), (0, 0)))

    grid = (n_pad // tm,)
    out = pl.pallas_call(
        verysimplenet_kernel,
        out_shape=jax.ShapeDtypeStruct((n_pad, PAD_OUT), jnp.float32),
        grid=grid,
        in_specs=[
            pl.BlockSpec(memory_space=pltpu.MemorySpace.SMEM),          # weight scales
            pl.BlockSpec((tm, IN_FEATURES), lambda i: (i, 0)),          # x tile
            pl.BlockSpec((IN_FEATURES, PAD_H1), lambda i: (0, 0)),      # w1 (resident)
            pl.BlockSpec((PAD_H1, PAD_H2), lambda i: (0, 0)),           # w2 (resident)
            pl.BlockSpec((PAD_H2, PAD_OUT), lambda i: (0, 0)),          # w3 (resident)
        ],
        out_specs=pl.BlockSpec((tm, PAD_OUT), lambda i: (i, 0)),
        compiler_params=pltpu.CompilerParams(
            dimension_semantics=("parallel",),
        ),
    )(wscales, x2d, wq1, wq2, wq3)

    return out[:n, :OUT_FEATURES]


# ---------------------------------------------------------------------------
# Params / test
# ---------------------------------------------------------------------------
def init_params(key):
    k1, k2, k3 = jax.random.split(key, 3)

    def linear_init(k, out_f, in_f):
        bound = 1.0 / jnp.sqrt(jnp.float32(in_f))
        return jax.random.uniform(
            k, (out_f, in_f), jnp.float32, minval=-bound, maxval=bound
        )

    w1 = linear_init(k1, HIDDEN_1, IN_FEATURES)
    w2 = linear_init(k2, HIDDEN_2, HIDDEN_1)
    w3 = linear_init(k3, OUT_FEATURES, HIDDEN_2)
    return w1, w2, w3


if __name__ == "__main__":
    key = jax.random.PRNGKey(0)
    kx, kp = jax.random.split(key)

    # Small MNIST-like batch: (N, C, H, W) = (8, 1, 28, 28)
    x = jax.random.normal(kx, (8, 1, 28, 28), jnp.float32)
    w1, w2, w3 = init_params(kp)

    out = jax.block_until_ready(verysimplenet_forward(x, w1, w2, w3))
    ref = verysimplenet_reference(x, w1, w2, w3)

    assert out.shape == (8, OUT_FEATURES)
    # Tolerance covers the (bit-level) fp-order difference of post-scaling the
    # integer matmul vs. the reference's divide-before-matmul formulation.
    assert jnp.allclose(out, ref, atol=1e-3, rtol=1e-3), float(
        jnp.max(jnp.abs(out - ref))
    )

    print("KERNEL_OK")
</pallas_src>

<mosaic_0001>
module attributes {stable_mosaic.version = 11 : i64} {
  func.func @verysimplenet_kernel(%arg0: i32, %arg1: memref<3xf32, #tpu.memory_space<smem>>, %arg2: memref<8x784xf32, #tpu.memory_space<vmem>>, %arg3: memref<784x128xbf16, #tpu.memory_space<vmem>>, %arg4: memref<128x128xbf16, #tpu.memory_space<vmem>>, %arg5: memref<128x128xbf16, #tpu.memory_space<vmem>>, %arg6: memref<8x128xf32, #tpu.memory_space<vmem>>) attributes {dimension_semantics = [#tpu.dimension_semantics<parallel>], iteration_bounds = array<i64: 1>, scalar_prefetch = 0 : i64, scratch_operands = 0 : i64, tpu.core_type = #tpu.core_type<tc>, window_params = [{transform_indices = @transform_0, window_bounds = array<i64: 3>}, {transform_indices = @transform_1, window_bounds = array<i64: 8, 784>}, {pipeline_mode = #tpu.pipeline_mode<synchronous>, transform_indices = @transform_2, window_bounds = array<i64: 784, 128>}, {pipeline_mode = #tpu.pipeline_mode<synchronous>, transform_indices = @transform_3, window_bounds = array<i64: 128, 128>}, {pipeline_mode = #tpu.pipeline_mode<synchronous>, transform_indices = @transform_4, window_bounds = array<i64: 128, 128>}, {transform_indices = @transform_5, window_bounds = array<i64: 8, 128>}]} {
    %c0 = arith.constant 0 : index
    %c0_0 = arith.constant 0 : index
    %0 = vector.load %arg2[%c0, %c0_0] : memref<8x784xf32, #tpu.memory_space<vmem>>, vector<8x784xf32>
    %c0_1 = arith.constant 0 : index
    %1 = memref.load %arg1[%c0_1] : memref<3xf32, #tpu.memory_space<smem>>
    %2 = math.absf %0 : vector<8x784xf32>
    %cst = arith.constant dense<0xFF800000> : vector<8xf32>
    %3 = vector.multi_reduction <maximumf>, %2, %cst [1] : vector<8x784xf32> to vector<8xf32>
    %4 = vector.shape_cast %3 : vector<8xf32> to vector<8x1xf32>
    %cst_2 = arith.constant 9.99999974E-6 : f32
    %5 = vector.broadcast %cst_2 : f32 to vector<8x1xf32>
    %6 = arith.maximumf %4, %5 : vector<8x1xf32>
    %cst_3 = arith.constant 1.270000e+02 : f32
    %7 = vector.broadcast %cst_3 : f32 to vector<8x1xf32>
    %8 = arith.divf %7, %6 : vector<8x1xf32>
    %9 = vector.broadcast %8 : vector<8x1xf32> to vector<8x784xf32>
    %10 = arith.mulf %0, %9 : vector<8x784xf32>
    %11 = math.roundeven %10 : vector<8x784xf32>
    %cst_4 = arith.constant -1.280000e+02 : f32
    %cst_5 = arith.constant 1.270000e+02 : f32
    %12 = vector.broadcast %cst_4 : f32 to vector<8x784xf32>
    %13 = arith.maximumf %12, %11 : vector<8x784xf32>
    %14 = vector.broadcast %cst_5 : f32 to vector<8x784xf32>
    %15 = arith.minimumf %14, %13 : vector<8x784xf32>
    %16 = arith.truncf %15 : vector<8x784xf32> to vector<8x784xbf16>
    %cst_6 = arith.constant 0.00787401571 : f32
    %17 = vector.broadcast %cst_6 : f32 to vector<8x1xf32>
    %18 = arith.mulf %6, %17 : vector<8x1xf32>
    %c0_7 = arith.constant 0 : index
    %c0_8 = arith.constant 0 : index
    %19 = vector.load %arg3[%c0_7, %c0_8] : memref<784x128xbf16, #tpu.memory_space<vmem>>, vector<784x128xbf16>
    %cst_9 = arith.constant dense<0.000000e+00> : vector<8x128xf32>
    %20 = tpu.matmul %16, %19, %cst_9 {dimension_numbers = #tpu.dot_dimension_numbers<[1], [0], [0], [1], [0, 0, 1, 1], [], []>} : vector<8x784xbf16>, vector<784x128xbf16>, vector<8x128xf32> -> vector<8x128xf32>
    %21 = vector.broadcast %1 : f32 to vector<8x1xf32>
    %22 = arith.mulf %18, %21 : vector<8x1xf32>
    %23 = vector.broadcast %22 : vector<8x1xf32> to vector<8x128xf32>
    %24 = arith.mulf %20, %23 : vector<8x128xf32>
    %cst_10 = arith.constant 0.000000e+00 : f32
    %25 = vector.broadcast %cst_10 : f32 to vector<8x128xf32>
    %26 = arith.maximumf %24, %25 : vector<8x128xf32>
    %c1 = arith.constant 1 : index
    %27 = memref.load %arg1[%c1] : memref<3xf32, #tpu.memory_space<smem>>
    %28 = math.absf %26 : vector<8x128xf32>
    %cst_11 = arith.constant dense<0xFF800000> : vector<8xf32>
    %29 = vector.multi_reduction <maximumf>, %28, %cst_11 [1] : vector<8x128xf32> to vector<8xf32>
    %30 = vector.shape_cast %29 : vector<8xf32> to vector<8x1xf32>
    %cst_12 = arith.constant 9.99999974E-6 : f32
    %31 = vector.broadcast %cst_12 : f32 to vector<8x1xf32>
    %32 = arith.maximumf %30, %31 : vector<8x1xf32>
    %cst_13 = arith.constant 1.270000e+02 : f32
    %33 = vector.broadcast %cst_13 : f32 to vector<8x1xf32>
    %34 = arith.divf %33, %32 : vector<8x1xf32>
    %35 = vector.broadcast %34 : vector<8x1xf32> to vector<8x128xf32>
    %36 = arith.mulf %26, %35 : vector<8x128xf32>
    %37 = math.roundeven %36 : vector<8x128xf32>
    %cst_14 = arith.constant -1.280000e+02 : f32
    %cst_15 = arith.constant 1.270000e+02 : f32
    %38 = vector.broadcast %cst_14 : f32 to vector<8x128xf32>
    %39 = arith.maximumf %38, %37 : vector<8x128xf32>
    %40 = vector.broadcast %cst_15 : f32 to vector<8x128xf32>
    %41 = arith.minimumf %40, %39 : vector<8x128xf32>
    %42 = arith.truncf %41 : vector<8x128xf32> to vector<8x128xbf16>
    %cst_16 = arith.constant 0.00787401571 : f32
    %43 = vector.broadcast %cst_16 : f32 to vector<8x1xf32>
    %44 = arith.mulf %32, %43 : vector<8x1xf32>
    %c0_17 = arith.constant 0 : index
    %c0_18 = arith.constant 0 : index
    %45 = vector.load %arg4[%c0_17, %c0_18] : memref<128x128xbf16, #tpu.memory_space<vmem>>, vector<128x128xbf16>
    %cst_19 = arith.constant dense<0.000000e+00> : vector<8x128xf32>
    %46 = tpu.matmul %42, %45, %cst_19 {dimension_numbers = #tpu.dot_dimension_numbers<[1], [0], [0], [1], [0, 0, 1, 1], [], []>} : vector<8x128xbf16>, vector<128x128xbf16>, vector<8x128xf32> -> vector<8x128xf32>
    %47 = vector.broadcast %27 : f32 to vector<8x1xf32>
    %48 = arith.mulf %44, %47 : vector<8x1xf32>
    %49 = vector.broadcast %48 : vector<8x1xf32> to vector<8x128xf32>
    %50 = arith.mulf %46, %49 : vector<8x128xf32>
    %cst_20 = arith.constant 0.000000e+00 : f32
    %51 = vector.broadcast %cst_20 : f32 to vector<8x128xf32>
    %52 = arith.maximumf %50, %51 : vector<8x128xf32>
    %c2 = arith.constant 2 : index
    %53 = memref.load %arg1[%c2] : memref<3xf32, #tpu.memory_space<smem>>
    %54 = math.absf %52 : vector<8x128xf32>
    %cst_21 = arith.constant dense<0xFF800000> : vector<8xf32>
    %55 = vector.multi_reduction <maximumf>, %54, %cst_21 [1] : vector<8x128xf32> to vector<8xf32>
    %56 = vector.shape_cast %55 : vector<8xf32> to vector<8x1xf32>
    %cst_22 = arith.constant 9.99999974E-6 : f32
    %57 = vector.broadcast %cst_22 : f32 to vector<8x1xf32>
    %58 = arith.maximumf %56, %57 : vector<8x1xf32>
    %cst_23 = arith.constant 1.270000e+02 : f32
    %59 = vector.broadcast %cst_23 : f32 to vector<8x1xf32>
    %60 = arith.divf %59, %58 : vector<8x1xf32>
    %61 = vector.broadcast %60 : vector<8x1xf32> to vector<8x128xf32>
    %62 = arith.mulf %52, %61 : vector<8x128xf32>
    %63 = math.roundeven %62 : vector<8x128xf32>
    %cst_24 = arith.constant -1.280000e+02 : f32
    %cst_25 = arith.constant 1.270000e+02 : f32
    %64 = vector.broadcast %cst_24 : f32 to vector<8x128xf32>
    %65 = arith.maximumf %64, %63 : vector<8x128xf32>
    %66 = vector.broadcast %cst_25 : f32 to vector<8x128xf32>
    %67 = arith.minimumf %66, %65 : vector<8x128xf32>
    %68 = arith.truncf %67 : vector<8x128xf32> to vector<8x128xbf16>
    %cst_26 = arith.constant 0.00787401571 : f32
    %69 = vector.broadcast %cst_26 : f32 to vector<8x1xf32>
    %70 = arith.mulf %58, %69 : vector<8x1xf32>
    %c0_27 = arith.constant 0 : index
    %c0_28 = arith.constant 0 : index
    %71 = vector.load %arg5[%c0_27, %c0_28] : memref<128x128xbf16, #tpu.memory_space<vmem>>, vector<128x128xbf16>
    %cst_29 = arith.constant dense<0.000000e+00> : vector<8x128xf32>
    %72 = tpu.matmul %68, %71, %cst_29 {dimension_numbers = #tpu.dot_dimension_numbers<[1], [0], [0], [1], [0, 0, 1, 1], [], []>} : vector<8x128xbf16>, vector<128x128xbf16>, vector<8x128xf32> -> vector<8x128xf32>
    %73 = vector.broadcast %53 : f32 to vector<8x1xf32>
    %74 = arith.mulf %70, %73 : vector<8x1xf32>
    %75 = vector.broadcast %74 : vector<8x1xf32> to vector<8x128xf32>
    %76 = arith.mulf %72, %75 : vector<8x128xf32>
    %c0_30 = arith.constant 0 : index
    %c0_31 = arith.constant 0 : index
    %77 = vector.load %arg6[%c0_30, %c0_31] : memref<8x128xf32, #tpu.memory_space<vmem>>, vector<8x128xf32>
    tpu.vector_store %arg6[%c0_30, %c0_31], %76 {strides = array<i32>} : memref<8x128xf32, #tpu.memory_space<vmem>>, vector<8x128xf32>,
    return
  }
  func.func @transform_0(%arg0: i32) -> i32 {
    %c0_i32 = arith.constant 0 : i32
    %c0_i32_0 = arith.constant 0 : i32
    return %c0_i32 : i32
  }
  func.func @transform_1(%arg0: i32) -> (i32, i32) {
    %c0_i32 = arith.constant 0 : i32
    %c0_i32_0 = arith.constant 0 : i32
    return %arg0, %c0_i32 : i32, i32
  }
  func.func @transform_2(%arg0: i32) -> (i32, i32) {
    %c0_i32 = arith.constant 0 : i32
    %c0_i32_0 = arith.constant 0 : i32
    %c0_i32_1 = arith.constant 0 : i32
    return %c0_i32, %c0_i32_0 : i32, i32
  }
  func.func @transform_3(%arg0: i32) -> (i32, i32) {
    %c0_i32 = arith.constant 0 : i32
    %c0_i32_0 = arith.constant 0 : i32
    %c0_i32_1 = arith.constant 0 : i32
    return %c0_i32, %c0_i32_0 : i32, i32
  }
  func.func @transform_4(%arg0: i32) -> (i32, i32) {
    %c0_i32 = arith.constant 0 : i32
    %c0_i32_0 = arith.constant 0 : i32
    %c0_i32_1 = arith.constant 0 : i32
    return %c0_i32, %c0_i32_0 : i32, i32
  }
  func.func @transform_5(%arg0: i32) -> (i32, i32) {
    %c0_i32 = arith.constant 0 : i32
    %c0_i32_0 = arith.constant 0 : i32
    return %arg0, %c0_i32 : i32, i32
  }
}

</mosaic_0001>

<llo_original>
// kernel: tpu_custom_call.1
$region0: #{tpu_custom_call.1}
  #allocation0 [shape = 'u32[]', space=smem, size = 0x4, offset = 0x4, fixed_abs, tag = 'smem constant byte address 0x4 - core index']
  #allocation1 [shape = 'u32[144,128]{1,0:T(1,128)}', space=vmem, size = 0x12000, scoped, tag = 'internal scratch']
  %s0 = inlined_call_operand.hbm [shape: f32[3], index: 0, kind: input, shape index: {}]
  %s1 = inlined_call_operand.hbm [shape: f32[8,784], index: 1, kind: input, shape index: {}]
  %s2 = inlined_call_operand.hbm [shape: bf16[784,128], index: 2, kind: input, shape index: {}]
  %s3 = inlined_call_operand.hbm [shape: bf16[128,128], index: 3, kind: input, shape index: {}]
  %s4 = inlined_call_operand.hbm [shape: bf16[128,128], index: 4, kind: input, shape index: {}]
  %s5 = inlined_call_operand.hbm [shape: f32[8,128], index: 5, kind: output, shape index: {}]
  %s6 = sld [smem:[#allocation0]]
  $region50: #{tpu_custom_call.1} parent=0
    _
  %s8 = ssub.s32 1, %s6
  %s9 = scalar_select 0, %s8, %s6
  $region1: #{tpu_custom_call.1} parent=0
    #allocation2 [shape = 'u8[512]{0}', space=smem, size = 0x200, scoped, tag = 'input window, operand 0, single buffered']
    #allocation3 [shape = 's32[1]{0}', space=sflag, size = 0x4, scoped, tag = 'scoped memory for tpu_custom_call.1']
    #allocation4 [shape = 's32[1]{0}', space=sflag, size = 0x4, scoped, tag = 'scoped memory for tpu_custom_call.1']
    #allocation5 [shape = 's32[1]{0}', space=sflag, size = 0x4, scoped, tag = 'scoped memory for tpu_custom_call.1']
    #allocation6 [shape = 'u8[28672]{0}', space=vmem, size = 0x7000, scoped, tag = 'input window, operand 1, single buffered']
    #allocation7 [shape = 'u8[200704]{0}', space=vmem, size = 0x31000, scoped, tag = 'input window, operand 2, single buffered']
    #allocation8 [shape = 's32[1]{0}', space=sflag, size = 0x4, scoped, tag = 'scoped memory for tpu_custom_call.1']
    #allocation9 [shape = 'u8[32768]{0}', space=vmem, size = 0x8000, scoped, tag = 'input window, operand 3, single buffered']
    #allocation10 [shape = 'u8[32768]{0}', space=vmem, size = 0x8000, scoped, tag = 'input window, operand 4, single buffered']
    #allocation11 [shape = 's32[1]{0}', space=sflag, size = 0x4, scoped, tag = 'scoped memory for tpu_custom_call.1']
    #allocation12 [shape = 'u8[4096]{0}', space=vmem, size = 0x1000, scoped, tag = 'output window, operand 0, single buffered']
    %10 = vsyncpa [#allocation5], 0
    %11 = vsyncpa [#allocation3], 0
    %12 = vsyncpa [#allocation8], 0
    %13 = vsyncpa [#allocation11], 0
    %14 = vsyncpa [#allocation4], 0
    // Predicated region
    $region2: #{tpu_custom_call.1} parent=1 // pred_check
      _
    $region3: #{tpu_custom_call.1} parent=1 // pred_check_branch
      %16 = sbr.rel (0) target = $region5
    $region4: #{tpu_custom_call.1} parent=1 // pred_region
      %s18 = ssub.s32 16, 16
      %19 = vsyncadd [#allocation5], %s18
      %22 = dma.hbm_to_smem %s0, 16, [#allocation2], [#allocation5]
    $region5: #{tpu_custom_call.1} parent=1 // pred_fallthru
      _
    // Predicated region
    $region6: #{tpu_custom_call.1} parent=1 // pred_check
      _
    $region7: #{tpu_custom_call.1} parent=1 // pred_check_branch
      %24 = sbr.rel (0) target = $region9
    $region8: #{tpu_custom_call.1} parent=1 // pred_region
      %s26 = ssub.s32 896, 896
      %27 = vsyncadd [#allocation3], %s26
      %s29 = sshll.u32 [#allocation6], 4
      %s30 = int_to_ptr.vmem [resolvable:$true] %s29
      %32 = dma.hbm_to_vmem [thread:$0]  %s1, 896, %s30, [#allocation3]
    $region9: #{tpu_custom_call.1} parent=1 // pred_fallthru
      _
    // Predicated region
    $region10: #{tpu_custom_call.1} parent=1 // pred_check
      _
    $region11: #{tpu_custom_call.1} parent=1 // pred_check_branch
      %34 = sbr.rel (0) target = $region13
    $region12: #{tpu_custom_call.1} parent=1 // pred_region
      %s36 = ssub.s32 6272, 6272
      %37 = vsyncadd [#allocation8], %s36
      %s38 = sshll.u32 [#allocation7], 4
      %s39 = int_to_ptr.vmem [resolvable:$true] %s38
      %44 = dma.hbm_to_vmem [thread:$0]  %s2, 6272, %s39, [#allocation8], 64, 64, 4
    $region13: #{tpu_custom_call.1} parent=1 // pred_fallthru
      _
    // Predicated region
    $region14: #{tpu_custom_call.1} parent=1 // pred_check
      _
    $region15: #{tpu_custom_call.1} parent=1 // pred_check_branch
      %46 = sbr.rel (0) target = $region17
    $region16: #{tpu_custom_call.1} parent=1 // pred_region
      %s48 = ssub.s32 1024, 1024
      %49 = vsyncadd [#allocation8], %s48
      %s50 = sshll.u32 [#allocation9], 4
      %s51 = int_to_ptr.vmem [resolvable:$true] %s50
      %56 = dma.hbm_to_vmem [thread:$0]  %s3, 1024, %s51, [#allocation8], 64, 64, 4
    $region17: #{tpu_custom_call.1} parent=1 // pred_fallthru
      _
    // Predicated region
    $region18: #{tpu_custom_call.1} parent=1 // pred_check
      _
    $region19: #{tpu_custom_call.1} parent=1 // pred_check_branch
      %58 = sbr.rel (0) target = $region21
    $region20: #{tpu_custom_call.1} parent=1 // pred_region
      %s60 = ssub.s32 1024, 1024
      %61 = vsyncadd [#allocation11], %s60
      %s62 = sshll.u32 [#allocation10], 4
      %s63 = int_to_ptr.vmem [resolvable:$true] %s62
      %68 = dma.hbm_to_vmem [thread:$0]  %s4, 1024, %s63, [#allocation11], 64, 64, 4
    $region21: #{tpu_custom_call.1} parent=1 // pred_fallthru
      _
    // Predicated region
    $region22: #{tpu_custom_call.1} parent=1 // pred_check
      _
    $region23: #{tpu_custom_call.1} parent=1 // pred_check_branch
      %70 = sbr.rel (0) target = $region25
    $region24: #{tpu_custom_call.1} parent=1 // pred_region
      %71 = dma.done [#allocation5], 16
    $region25: #{tpu_custom_call.1} parent=1 // pred_fallthru
      _
    // Predicated region
    $region26: #{tpu_custom_call.1} parent=1 // pred_check
      _
    $region27: #{tpu_custom_call.1} parent=1 // pred_check_branch
      %73 = sbr.rel (0) target = $region29
    $region28: #{tpu_custom_call.1} parent=1 // pred_region
      %74 = dma.done [#allocation3], 896
    $region29: #{tpu_custom_call.1} parent=1 // pred_fallthru
      _
    // Predicated region
    $region30: #{tpu_custom_call.1} parent=1 // pred_check
      _
    $region31: #{tpu_custom_call.1} parent=1 // pred_check_branch
      %76 = sbr.rel (0) target = $region33
    $region32: #{tpu_custom_call.1} parent=1 // pred_region
      %77 = dma.done [#allocation8], 6272
    $region33: #{tpu_custom_call.1} parent=1 // pred_fallthru
      _
    // Predicated region
    $region34: #{tpu_custom_call.1} parent=1 // pred_check
      _
    $region35: #{tpu_custom_call.1} parent=1 // pred_check_branch
      %79 = sbr.rel (0) target = $region37
    $region36: #{tpu_custom_call.1} parent=1 // pred_region
      %80 = dma.done [#allocation8], 1024
    $region37: #{tpu_custom_call.1} parent=1 // pred_fallthru
      _
    // Predicated region
    $region38: #{tpu_custom_call.1} parent=1 // pred_check
      _
    $region39: #{tpu_custom_call.1} parent=1 // pred_check_branch
      %82 = sbr.rel (0) target = $region41
    $region40: #{tpu_custom_call.1} parent=1 // pred_region
      %83 = dma.done [#allocation11], 1024
    $region41: #{tpu_custom_call.1} parent=1 // pred_fallthru
      _
    %84 = sfence
    %v86 = vld [vmem:[#allocation6] sm:$0xff]
    %v87 = vld [vmem:[#allocation6 + $0x8] sm:$0xff]
    %v88 = vld [vmem:[#allocation6 + $0x10] sm:$0xff]
    %v89 = vld [vmem:[#allocation6 + $0x18] sm:$0xff]
    %v90 = vld [vmem:[#allocation6 + $0x20] sm:$0xff]
    %v91 = vld [vmem:[#allocation6 + $0x28] sm:$0xff]
    %v92 = vld [vmem:[#allocation6 + $0x30] sm:$0xff]
    %s93 = sld [smem:[#allocation2]]
    %v94 = vand.u32 2147483647, %v86
    %v95 = vand.u32 2147483647, %v87
    %v96 = vand.u32 2147483647, %v88
    %v97 = vand.u32 2147483647, %v89
    %v98 = vand.u32 2147483647, %v90
    %v99 = vand.u32 2147483647, %v91
    %v100 = vand.u32 2147483647, %v92
    %v101 = vmax.f32 %v94, %v98
    %v102 = vmax.f32 %v95, %v99
    %vm103 = vcmask 130048
    %v104 = vsel %vm103, %v100, -inf
    %v105 = vmax.f32 %v96, %v104
    %v106 = vmax.f32 %v101, %v102
    %v107 = vmax.f32 %v105, %v97
    %v108 = vmax.f32 %v106, %v107
    %109 = vmax.xlane.f32.xlu0 %v108
    %v110 = vpop.xlane.xlu0 %109
    %v111 = vmax.f32 %v110, 1e-05
    %v112 = vrcp.pop %v111
    %v113 = vmul.f32 127.0, %v112
    %v114 = vmul.f32 %v86, %v113
    %v115 = vmul.f32 %v87, %v113
    %v116 = vmul.f32 %v88, %v113
    %v117 = vmul.f32 %v89, %v113
    %v118 = vmul.f32 %v90, %v113
    %v119 = vmul.f32 %v91, %v113
    %v120 = vmul.f32 %v92, %v113
    %v121 = vround.ne.pseudo %v114
    %v122 = vround.ne.pseudo %v115
    %v123 = vround.ne.pseudo %v116
    %v124 = vround.ne.pseudo %v117
    %v125 = vround.ne.pseudo %v118
    %v126 = vround.ne.pseudo %v119
    %v127 = vround.ne.pseudo %v120
    %v128 = vmax.f32 %v121, -128.0
    %v129 = vmax.f32 %v122, -128.0
    %v130 = vmax.f32 %v123, -128.0
    %v131 = vmax.f32 %v124, -128.0
    %v132 = vmax.f32 %v125, -128.0
    %v133 = vmax.f32 %v126, -128.0
    %v134 = vmax.f32 %v127, -128.0
    %v135 = vmin.f32 %v128, 127.0
    %v136 = vmin.f32 %v129, 127.0
    %v137 = vmin.f32 %v130, 127.0
    %v138 = vmin.f32 %v131, 127.0
    %v139 = vmin.f32 %v132, 127.0
    %v140 = vmin.f32 %v133, 127.0
    %v141 = vmin.f32 %v134, 127.0
    %v142 = vpack.c.bf16 %v135, %v135
    %v143 = vpack.c.bf16 %v136, %v136
    %v144 = vpack.c.bf16 %v137, %v137
    %v145 = vpack.c.bf16 %v138, %v138
    %v146 = vpack.c.bf16 %v139, %v139
    %v147 = vpack.c.bf16 %v140, %v140
    %v148 = vpack.c.bf16 %v141, %v141
    %v149 = vmul.f32 %v111, 0.007874016
    %v150 = vld [vmem:[#allocation7] sm:$0xf]
    %v151 = vld [vmem:[#allocation7 + $0x4] sm:$0xf]
    %v152 = vld [vmem:[#allocation7 + $0x8] sm:$0xf]
    %v153 = vld [vmem:[#allocation7 + $0xc] sm:$0xf]
    %v154 = vld [vmem:[#allocation7 + $0x10] sm:$0xf]
    %v155 = vld [vmem:[#allocation7 + $0x14] sm:$0xf]
    %v156 = vld [vmem:[#allocation7 + $0x18] sm:$0xf]
    %v157 = vld [vmem:[#allocation7 + $0x1c] sm:$0xf]
    %v158 = vld [vmem:[#allocation7 + $0x20] sm:$0xf]
    %v159 = vld [vmem:[#allocation7 + $0x24] sm:$0xf]
    %v160 = vld [vmem:[#allocation7 + $0x28] sm:$0xf]
    %v161 = vld [vmem:[#allocation7 + $0x2c] sm:$0xf]
    %v162 = vld [vmem:[#allocation7 + $0x30] sm:$0xf]
    %v163 = vld [vmem:[#allocation7 + $0x34] sm:$0xf]
    %v164 = vld [vmem:[#allocation7 + $0x38] sm:$0xf]
    %v165 = vld [vmem:[#allocation7 + $0x3c] sm:$0xf]
    %v166 = vld [vmem:[#allocation7 + $0x40] sm:$0xf]
    %v167 = vld [vmem:[#allocation7 + $0x44] sm:$0xf]
    %v168 = vld [vmem:[#allocation7 + $0x48] sm:$0xf]
    %v169 = vld [vmem:[#allocation7 + $0x4c] sm:$0xf]
    %v170 = vld [vmem:[#allocation7 + $0x50] sm:$0xf]
    %v171 = vld [vmem:[#allocation7 + $0x54] sm:$0xf]
    %v172 = vld [vmem:[#allocation7 + $0x58] sm:$0xf]
    %v173 = vld [vmem:[#allocation7 + $0x5c] sm:$0xf]
    %v174 = vld [vmem:[#allocation7 + $0x60] sm:$0xf]
    %v175 = vld [vmem:[#allocation7 + $0x64] sm:$0xf]
    %v176 = vld [vmem:[#allocation7 + $0x68] sm:$0xf]
    %v177 = vld [vmem:[#allocation7 + $0x6c] sm:$0xf]
    %v178 = vld [vmem:[#allocation7 + $0x70] sm:$0xf]
    %v179 = vld [vmem:[#allocation7 + $0x74] sm:$0xf]
    %v180 = vld [vmem:[#allocation7 + $0x78] sm:$0xf]
    %v181 = vld [vmem:[#allocation7 + $0x7c] sm:$0xf]
    %v182 = vld [vmem:[#allocation7 + $0x80] sm:$0xf]
    %v183 = vld [vmem:[#allocation7 + $0x84] sm:$0xf]
    %v184 = vld [vmem:[#allocation7 + $0x88] sm:$0xf]
    %v185 = vld [vmem:[#allocation7 + $0x8c] sm:$0xf]
    %v186 = vld [vmem:[#allocation7 + $0x90] sm:$0xf]
    %v187 = vld [vmem:[#allocation7 + $0x94] sm:$0xf]
    %v188 = vld [vmem:[#allocation7 + $0x98] sm:$0xf]
    %v189 = vld [vmem:[#allocation7 + $0x9c] sm:$0xf]
    %v190 = vld [vmem:[#allocation7 + $0xa0] sm:$0xf]
    %v191 = vld [vmem:[#allocation7 + $0xa4] sm:$0xf]
    %v192 = vld [vmem:[#allocation7 + $0xa8] sm:$0xf]
    %v193 = vld [vmem:[#allocation7 + $0xac] sm:$0xf]
    %v194 = vld [vmem:[#allocation7 + $0xb0] sm:$0xf]
    %v195 = vld [vmem:[#allocation7 + $0xb4] sm:$0xf]
    %v196 = vld [vmem:[#allocation7 + $0xb8] sm:$0xf]
    %v197 = vld [vmem:[#allocation7 + $0xbc] sm:$0xf]
    %v198 = vld [vmem:[#allocation7 + $0xc0] sm:$0xf]
    %v199 = vld [vmem:[#allocation7 + $0xc4] sm:$0xf]
    %v200 = vld [vmem:[#allocation7 + $0xc8] sm:$0xf]
    %v201 = vld [vmem:[#allocation7 + $0xcc] sm:$0xf]
    %v202 = vld [vmem:[#allocation7 + $0xd0] sm:$0xf]
    %v203 = vld [vmem:[#allocation7 + $0xd4] sm:$0xf]
    %v204 = vld [vmem:[#allocation7 + $0xd8] sm:$0xf]
    %v205 = vld [vmem:[#allocation7 + $0xdc] sm:$0xf]
    %v206 = vld [vmem:[#allocation7 + $0xe0] sm:$0xf]
    %v207 = vld [vmem:[#allocation7 + $0xe4] sm:$0xf]
    %v208 = vld [vmem:[#allocation7 + $0xe8] sm:$0xf]
    %v209 = vld [vmem:[#allocation7 + $0xec] sm:$0xf]
    %v210 = vld [vmem:[#allocation7 + $0xf0] sm:$0xf]
    %v211 = vld [vmem:[#allocation7 + $0xf4] sm:$0xf]
    %v212 = vld [vmem:[#allocation7 + $0xf8] sm:$0xf]
    %v213 = vld [vmem:[#allocation7 + $0xfc] sm:$0xf]
    %v214 = vld [vmem:[#allocation7 + $0x100] sm:$0xf]
    %v215 = vld [vmem:[#allocation7 + $0x104] sm:$0xf]
    %v216 = vld [vmem:[#allocation7 + $0x108] sm:$0xf]
    %v217 = vld [vmem:[#allocation7 + $0x10c] sm:$0xf]
    %v218 = vld [vmem:[#allocation7 + $0x110] sm:$0xf]
    %v219 = vld [vmem:[#allocation7 + $0x114] sm:$0xf]
    %v220 = vld [vmem:[#allocation7 + $0x118] sm:$0xf]
    %v221 = vld [vmem:[#allocation7 + $0x11c] sm:$0xf]
    %v222 = vld [vmem:[#allocation7 + $0x120] sm:$0xf]
    %v223 = vld [vmem:[#allocation7 + $0x124] sm:$0xf]
    %v224 = vld [vmem:[#allocation7 + $0x128] sm:$0xf]
    %v225 = vld [vmem:[#allocation7 + $0x12c] sm:$0xf]
    %v226 = vld [vmem:[#allocation7 + $0x130] sm:$0xf]
    %v227 = vld [vmem:[#allocation7 + $0x134] sm:$0xf]
    %v228 = vld [vmem:[#allocation7 + $0x138] sm:$0xf]
    %v229 = vld [vmem:[#allocation7 + $0x13c] sm:$0xf]
    %v230 = vld [vmem:[#allocation7 + $0x140] sm:$0xf]
    %v231 = vld [vmem:[#allocation7 + $0x144] sm:$0xf]
    %v232 = vld [vmem:[#allocation7 + $0x148] sm:$0xf]
    %v233 = vld [vmem:[#allocation7 + $0x14c] sm:$0xf]
    %v234 = vld [vmem:[#allocation7 + $0x150] sm:$0xf]
    %v235 = vld [vmem:[#allocation7 + $0x154] sm:$0xf]
    %v236 = vld [vmem:[#allocation7 + $0x158] sm:$0xf]
    %v237 = vld [vmem:[#allocation7 + $0x15c] sm:$0xf]
    %v238 = vld [vmem:[#allocation7 + $0x160] sm:$0xf]
    %v239 = vld [vmem:[#allocation7 + $0x164] sm:$0xf]
    %v240 = vld [vmem:[#allocation7 + $0x168] sm:$0xf]
    %v241 = vld [vmem:[#allocation7 + $0x16c] sm:$0xf]
    %v242 = vld [vmem:[#allocation7 + $0x170] sm:$0xf]
    %v243 = vld [vmem:[#allocation7 + $0x174] sm:$0xf]
    %v244 = vld [vmem:[#allocation7 + $0x178] sm:$0xf]
    %v245 = vld [vmem:[#allocation7 + $0x17c] sm:$0xf]
    %v246 = vld [vmem:[#allocation7 + $0x180] sm:$0xf]
    %v247 = vld [vmem:[#allocation7 + $0x184] sm:$0xf]
    %v346 = vunpack.c.l.b16 %v150
    %v347 = vunpack.c.l.b16 %v151
    %v348 = vunpack.c.l.b16 %v152
    %v349 = vunpack.c.l.b16 %v153
    %v350 = vunpack.c.l.b16 %v154
    %v351 = vunpack.c.l.b16 %v155
    %v352 = vunpack.c.l.b16 %v156
    %v353 = vunpack.c.l.b16 %v157
    %v354 = vunpack.c.l.b16 %v158
    %v355 = vunpack.c.l.b16 %v159
    %v356 = vunpack.c.l.b16 %v160
    %v357 = vunpack.c.l.b16 %v161
    %v358 = vunpack.c.l.b16 %v162
    %v359 = vunpack.c.l.b16 %v163
    %v360 = vunpack.c.l.b16 %v164
    %v361 = vunpack.c.l.b16 %v165
    %v362 = vunpack.c.l.b16 %v166
    %v363 = vunpack.c.l.b16 %v167
    %v364 = vunpack.c.l.b16 %v168
    %v365 = vunpack.c.l.b16 %v169
    %v366 = vunpack.c.l.b16 %v170
    %v367 = vunpack.c.l.b16 %v171
    %v368 = vunpack.c.l.b16 %v172
    %v369 = vunpack.c.l.b16 %v173
    %v370 = vunpack.c.l.b16 %v174
    %v371 = vunpack.c.l.b16 %v175
    %v372 = vunpack.c.l.b16 %v176
    %v373 = vunpack.c.l.b16 %v177
    %v374 = vunpack.c.l.b16 %v178
    %v375 = vunpack.c.l.b16 %v179
    %v376 = vunpack.c.l.b16 %v180
    %v377 = vunpack.c.l.b16 %v181
    %v378 = vunpack.c.l.b16 %v182
    %v379 = vunpack.c.l.b16 %v183
    %v380 = vunpack.c.l.b16 %v184
    %v381 = vunpack.c.l.b16 %v185
    %v382 = vunpack.c.l.b16 %v186
    %v383 = vunpack.c.l.b16 %v187
    %v384 = vunpack.c.l.b16 %v188
    %v385 = vunpack.c.l.b16 %v189
    %v386 = vunpack.c.l.b16 %v190
    %v387 = vunpack.c.l.b16 %v191
    %v388 = vunpack.c.l.b16 %v192
    %v389 = vunpack.c.l.b16 %v193
    %v390 = vunpack.c.l.b16 %v194
    %v391 = vunpack.c.l.b16 %v195
    %v392 = vunpack.c.l.b16 %v196
    %v393 = vunpack.c.l.b16 %v197
    %v394 = vunpack.c.l.b16 %v198
    %v395 = vunpack.c.l.b16 %v199
    %v396 = vunpack.c.l.b16 %v200
    %v397 = vunpack.c.l.b16 %v201
    %v398 = vunpack.c.l.b16 %v202
    %v399 = vunpack.c.l.b16 %v203
    %v400 = vunpack.c.l.b16 %v204
    %v401 = vunpack.c.l.b16 %v205
    %v402 = vunpack.c.l.b16 %v206
    %v403 = vunpack.c.l.b16 %v207
    %v404 = vunpack.c.l.b16 %v208
    %v405 = vunpack.c.l.b16 %v209
    %v406 = vunpack.c.l.b16 %v210
    %v407 = vunpack.c.l.b16 %v211
    %v408 = vunpack.c.l.b16 %v212
    %v409 = vunpack.c.l.b16 %v213
    %v410 = vunpack.c.l.b16 %v214
    %v411 = vunpack.c.l.b16 %v215
    %v412 = vunpack.c.l.b16 %v216
    %v413 = vunpack.c.l.b16 %v217
    %v414 = vunpack.c.l.b16 %v218
    %v415 = vunpack.c.l.b16 %v219
    %v416 = vunpack.c.l.b16 %v220
    %v417 = vunpack.c.l.b16 %v221
    %v418 = vunpack.c.l.b16 %v222
    %v419 = vunpack.c.l.b16 %v223
    %v420 = vunpack.c.l.b16 %v224
    %v421 = vunpack.c.l.b16 %v225
    %v422 = vunpack.c.l.b16 %v226
    %v423 = vunpack.c.l.b16 %v227
    %v424 = vunpack.c.l.b16 %v228
    %v425 = vunpack.c.l.b16 %v229
    %v426 = vunpack.c.l.b16 %v230
    %v427 = vunpack.c.l.b16 %v231
    %v428 = vunpack.c.l.b16 %v232
    %v429 = vunpack.c.l.b16 %v233
    %v430 = vunpack.c.l.b16 %v234
    %v431 = vunpack.c.l.b16 %v235
    %v432 = vunpack.c.l.b16 %v236
    %v433 = vunpack.c.l.b16 %v237
    %v434 = vunpack.c.l.b16 %v238
    %v435 = vunpack.c.l.b16 %v239
    %v436 = vunpack.c.l.b16 %v240
    %v437 = vunpack.c.l.b16 %v241
    %v438 = vunpack.c.l.b16 %v242
    %v439 = vunpack.c.l.b16 %v243
    %v440 = vunpack.c.l.b16 %v244
    %v441 = vunpack.c.l.b16 %v245
    %v442 = vunpack.c.l.b16 %v246
    %v443 = vunpack.c.l.b16 %v247
    %v444 = vpack.c.b16 %v347, %v346
    %v445 = vpack.c.b16 %v349, %v348
    %v446 = vpack.c.b16 %v351, %v350
    %v447 = vpack.c.b16 %v353, %v352
    %v448 = vpack.c.b16 %v355, %v354
    %v449 = vpack.c.b16 %v357, %v356
    %v450 = vpack.c.b16 %v359, %v358
    %v451 = vpack.c.b16 %v361, %v360
    %v452 = vpack.c.b16 %v363, %v362
    %v453 = vpack.c.b16 %v365, %v364
    %v454 = vpack.c.b16 %v367, %v366
    %v455 = vpack.c.b16 %v369, %v368
    %v456 = vpack.c.b16 %v371, %v370
    %v457 = vpack.c.b16 %v373, %v372
    %v458 = vpack.c.b16 %v375, %v374
    %v459 = vpack.c.b16 %v377, %v376
    %v460 = vpack.c.b16 %v379, %v378
    %v461 = vpack.c.b16 %v381, %v380
    %v462 = vpack.c.b16 %v383, %v382
    %v463 = vpack.c.b16 %v385, %v384
    %v464 = vpack.c.b16 %v387, %v386
    %v465 = vpack.c.b16 %v389, %v388
    %v466 = vpack.c.b16 %v391, %v390
    %v467 = vpack.c.b16 %v393, %v392
    %v468 = vpack.c.b16 %v395, %v394
    %v469 = vpack.c.b16 %v397, %v396
    %v470 = vpack.c.b16 %v399, %v398
    %v471 = vpack.c.b16 %v401, %v400
    %v472 = vpack.c.b16 %v403, %v402
    %v473 = vpack.c.b16 %v405, %v404
    %v474 = vpack.c.b16 %v407, %v406
    %v475 = vpack.c.b16 %v409, %v408
    %v476 = vpack.c.b16 %v411, %v410
    %v477 = vpack.c.b16 %v413, %v412
    %v478 = vpack.c.b16 %v415, %v414
    %v479 = vpack.c.b16 %v417, %v416
    %v480 = vpack.c.b16 %v419, %v418
    %v481 = vpack.c.b16 %v421, %v420
    %v482 = vpack.c.b16 %v423, %v422
    %v483 = vpack.c.b16 %v425, %v424
    %v484 = vpack.c.b16 %v427, %v426
    %v485 = vpack.c.b16 %v429, %v428
    %v486 = vpack.c.b16 %v431, %v430
    %v487 = vpack.c.b16 %v433, %v432
    %v488 = vpack.c.b16 %v435, %v434
    %v489 = vpack.c.b16 %v437, %v436
    %v490 = vpack.c.b16 %v439, %v438
    %v491 = vpack.c.b16 %v441, %v440
    %v492 = vpack.c.b16 %v443, %v442
    %v543 = vsel %vm103, %v148, 0
    %545 = vmatprep.subr.bf16.mxu0 0
    %546 = vmatpush1.bf16.msra.mxu0 %v444
    %547 = vmatprep.subr.bf16.mxu0 0
    %548 = vmatpush1.bf16.msra.mxu0 %v445
    %549 = vmatprep.subr.bf16.mxu0 0
    %550 = vmatpush1.bf16.msra.mxu0 %v446
    %551 = vmatprep.subr.bf16.mxu0 0
    %552 = vmatpush1.bf16.msra.mxu0 %v447
    %553 = vmatprep.subr.bf16.mxu0 0
    %554 = vmatpush1.bf16.msra.mxu0 %v448
    %555 = vmatprep.subr.bf16.mxu0 0
    %556 = vmatpush1.bf16.msra.mxu0 %v449
    %557 = vmatprep.subr.bf16.mxu0 0
    %558 = vmatpush1.bf16.msra.mxu0 %v450
    %559 = vmatprep.subr.bf16.mxu0 0
    %560 = vmatpush1.bf16.msra.mxu0 %v451
    %561 = vmatprep.subr.bf16.mxu0 0
    %562 = vmatpush1.bf16.msra.mxu0 %v452
    %563 = vmatprep.subr.bf16.mxu0 0
    %564 = vmatpush1.bf16.msra.mxu0 %v453
    %565 = vmatprep.subr.bf16.mxu0 0
    %566 = vmatpush1.bf16.msra.mxu0 %v454
    %567 = vmatprep.subr.bf16.mxu0 0
    %568 = vmatpush1.bf16.msra.mxu0 %v455
    %569 = vmatprep.subr.bf16.mxu0 0
    %570 = vmatpush1.bf16.msra.mxu0 %v456
    %571 = vmatprep.subr.bf16.mxu0 0
    %572 = vmatpush1.bf16.msra.mxu0 %v457
    %573 = vmatprep.subr.bf16.mxu0 0
    %574 = vmatpush1.bf16.msra.mxu0 %v458
    %575 = vmatprep.subr.bf16.mxu0 0
    %576 = vmatpush1.bf16.msra.mxu0 %v459
    %577 = vmatprep.mubr.bf16.mxu0 %v143
    %578 = vmatmul.mubr.bf16.gmra.mrb[0].mxu0 %v142
    %v579 = vpop.f32.mrb[0].mxu0
    %v580 = vadd.f32 0.0, %v579
    %v581 = vpop.f32.mrb[0].mxu0
    %v582 = vpop.f32.mrb[0].mxu0
    %v583 = vpop.f32.mrb[0].mxu0
    %584 = vdwg.mxu0
    %585 = vmatprep.subr.bf16.mxu0 0
    %586 = vmatpush1.bf16.msra.mxu0 %v460
    %587 = vmatprep.subr.bf16.mxu0 0
    %588 = vmatpush1.bf16.msra.mxu0 %v461
    %589 = vmatprep.subr.bf16.mxu0 0
    %590 = vmatpush1.bf16.msra.mxu0 %v462
    %591 = vmatprep.subr.bf16.mxu0 0
    %592 = vmatpush1.bf16.msra.mxu0 %v463
    %593 = vmatprep.subr.bf16.mxu0 0
    %594 = vmatpush1.bf16.msra.mxu0 %v464
    %595 = vmatprep.subr.bf16.mxu0 0
    %596 = vmatpush1.bf16.msra.mxu0 %v465
    %597 = vmatprep.subr.bf16.mxu0 0
    %598 = vmatpush1.bf16.msra.mxu0 %v466
    %599 = vmatprep.subr.bf16.mxu0 0
    %600 = vmatpush1.bf16.msra.mxu0 %v467
    %601 = vmatprep.subr.bf16.mxu0 0
    %602 = vmatpush1.bf16.msra.mxu0 %v468
    %603 = vmatprep.subr.bf16.mxu0 0
    %604 = vmatpush1.bf16.msra.mxu0 %v469
    %605 = vmatprep.subr.bf16.mxu0 0
    %606 = vmatpush1.bf16.msra.mxu0 %v470
    %607 = vmatprep.subr.bf16.mxu0 0
    %608 = vmatpush1.bf16.msra.mxu0 %v471
    %609 = vmatprep.subr.bf16.mxu0 0
    %610 = vmatpush1.bf16.msra.mxu0 %v472
    %611 = vmatprep.subr.bf16.mxu0 0
    %612 = vmatpush1.bf16.msra.mxu0 %v473
    %613 = vmatprep.subr.bf16.mxu0 0
    %614 = vmatpush1.bf16.msra.mxu0 %v474
    %615 = vmatprep.subr.bf16.mxu0 0
    %616 = vmatpush1.bf16.msra.mxu0 %v475
    %617 = vmatprep.mubr.bf16.mxu0 %v145
    %618 = vmatmul.mubr.bf16.gmra.mrb[0].mxu0 %v144
    %v619 = vpop.f32.mrb[0].mxu0
    %v620 = vadd.f32 %v580, %v619
    %v621 = vpop.f32.mrb[0].mxu0
    %v622 = vpop.f32.mrb[0].mxu0
    %v623 = vpop.f32.mrb[0].mxu0
    %624 = vdwg.mxu0
    %625 = vmatprep.subr.bf16.mxu0 0
    %626 = vmatpush1.bf16.msra.mxu0 %v476
    %627 = vmatprep.subr.bf16.mxu0 0
    %628 = vmatpush1.bf16.msra.mxu0 %v477
    %629 = vmatprep.subr.bf16.mxu0 0
    %630 = vmatpush1.bf16.msra.mxu0 %v478
    %631 = vmatprep.subr.bf16.mxu0 0
    %632 = vmatpush1.bf16.msra.mxu0 %v479
    %633 = vmatprep.subr.bf16.mxu0 0
    %634 = vmatpush1.bf16.msra.mxu0 %v480
    %635 = vmatprep.subr.bf16.mxu0 0
    %636 = vmatpush1.bf16.msra.mxu0 %v481
    %637 = vmatprep.subr.bf16.mxu0 0
    %638 = vmatpush1.bf16.msra.mxu0 %v482
    %639 = vmatprep.subr.bf16.mxu0 0
    %640 = vmatpush1.bf16.msra.mxu0 %v483
    %641 = vmatprep.subr.bf16.mxu0 0
    %642 = vmatpush1.bf16.msra.mxu0 %v484
    %643 = vmatprep.subr.bf16.mxu0 0
    %644 = vmatpush1.bf16.msra.mxu0 %v485
    %645 = vmatprep.subr.bf16.mxu0 0
    %646 = vmatpush1.bf16.msra.mxu0 %v486
    %647 = vmatprep.subr.bf16.mxu0 0
    %648 = vmatpush1.bf16.msra.mxu0 %v487
    %649 = vmatprep.subr.bf16.mxu0 0
    %650 = vmatpush1.bf16.msra.mxu0 %v488
    %651 = vmatprep.subr.bf16.mxu0 0
    %652 = vmatpush1.bf16.msra.mxu0 %v489
    %653 = vmatprep.subr.bf16.mxu0 0
    %654 = vmatpush1.bf16.msra.mxu0 %v490
    %655 = vmatprep.subr.bf16.mxu0 0
    %656 = vmatpush1.bf16.msra.mxu0 %v491
    %657 = vmatprep.mubr.bf16.mxu0 %v147
    %658 = vmatmul.mubr.bf16.gmra.mrb[0].mxu0 %v146
    %v659 = vpop.f32.mrb[0].mxu0
    %v660 = vadd.f32 %v620, %v659
    %v661 = vpop.f32.mrb[0].mxu0
    %v662 = vpop.f32.mrb[0].mxu0
    %v663 = vpop.f32.mrb[0].mxu0
    %664 = vdwg.mxu0
    %665 = vmatprep.subr.bf16.mxu0 0
    %666 = vmatpush1.bf16.msra.mxu0 %v492
    %667 = vmatprep.subr.bf16.mxu0 0
    %668 = vmatpush1.bf16.msra.mxu0 0
    %669 = vmatprep.subr.bf16.mxu0 0
    %670 = vmatpush1.bf16.msra.mxu0 0
    %671 = vmatprep.subr.bf16.mxu0 0
    %672 = vmatpush1.bf16.msra.mxu0 0
    %673 = vmatprep.subr.bf16.mxu0 0
    %674 = vmatpush1.bf16.msra.mxu0 0
    %675 = vmatprep.subr.bf16.mxu0 0
    %676 = vmatpush1.bf16.msra.mxu0 0
    %677 = vmatprep.subr.bf16.mxu0 0
    %678 = vmatpush1.bf16.msra.mxu0 0
    %679 = vmatprep.subr.bf16.mxu0 0
    %680 = vmatpush1.bf16.msra.mxu0 0
    %681 = vmatprep.subr.bf16.mxu0 0
    %682 = vmatpush1.bf16.msra.mxu0 0
    %683 = vmatprep.subr.bf16.mxu0 0
    %684 = vmatpush1.bf16.msra.mxu0 0
    %685 = vmatprep.subr.bf16.mxu0 0
    %686 = vmatpush1.bf16.msra.mxu0 0
    %687 = vmatprep.subr.bf16.mxu0 0
    %688 = vmatpush1.bf16.msra.mxu0 0
    %689 = vmatprep.subr.bf16.mxu0 0
    %690 = vmatpush1.bf16.msra.mxu0 0
    %691 = vmatprep.subr.bf16.mxu0 0
    %692 = vmatpush1.bf16.msra.mxu0 0
    %693 = vmatprep.subr.bf16.mxu0 0
    %694 = vmatpush1.bf16.msra.mxu0 0
    %695 = vmatprep.subr.bf16.mxu0 0
    %696 = vmatpush1.bf16.msra.mxu0 0
    %697 = vmatprep.mubr.bf16.mxu0 0
    %698 = vmatmul.mubr.bf16.gmra.mrb[0].mxu0 %v543
    %v699 = vpop.f32.mrb[0].mxu0
    %v700 = vadd.f32 %v660, %v699
    %v701 = vpop.f32.mrb[0].mxu0
    %v702 = vpop.f32.mrb[0].mxu0
    %v703 = vpop.f32.mrb[0].mxu0
    %704 = vdwg.mxu0
    %v705 = vstv %s93
    %v706 = vmul.f32 %v149, %v705
    %v707 = vmul.f32 %v700, %v706
    %v708 = vmax.f32 %v707, 0.0
    %s709 = sld [smem:[#allocation2 + $0x1]]
    %v710 = vand.u32 2147483647, %v708
    %711 = vmax.xlane.f32.xlu0 %v710
    %v712 = vpop.xlane.xlu0 %711
    %v713 = vmax.f32 %v712, 1e-05
    %v714 = vrcp.pop %v713
    %v715 = vmul.f32 127.0, %v714
    %v716 = vmul.f32 %v708, %v715
    %v717 = vround.ne.pseudo %v716
    %v718 = vmax.f32 %v717, -128.0
    %v719 = vmin.f32 %v718, 127.0
    %v720 = vpack.c.bf16 %v719, %v719
    %v721 = vmul.f32 %v713, 0.007874016
    %v722 = vld [vmem:[#allocation9] sm:$0xf]
    %v723 = vld [vmem:[#allocation9 + $0x4] sm:$0xf]
    %v724 = vld [vmem:[#allocation9 + $0x8] sm:$0xf]
    %v725 = vld [vmem:[#allocation9 + $0xc] sm:$0xf]
    %v726 = vld [vmem:[#allocation9 + $0x10] sm:$0xf]
    %v727 = vld [vmem:[#allocation9 + $0x14] sm:$0xf]
    %v728 = vld [vmem:[#allocation9 + $0x18] sm:$0xf]
    %v729 = vld [vmem:[#allocation9 + $0x1c] sm:$0xf]
    %v730 = vld [vmem:[#allocation9 + $0x20] sm:$0xf]
    %v731 = vld [vmem:[#allocation9 + $0x24] sm:$0xf]
    %v732 = vld [vmem:[#allocation9 + $0x28] sm:$0xf]
    %v733 = vld [vmem:[#allocation9 + $0x2c] sm:$0xf]
    %v734 = vld [vmem:[#allocation9 + $0x30] sm:$0xf]
    %v735 = vld [vmem:[#allocation9 + $0x34] sm:$0xf]
    %v736 = vld [vmem:[#allocation9 + $0x38] sm:$0xf]
    %v737 = vld [vmem:[#allocation9 + $0x3c] sm:$0xf]
    %v754 = vunpack.c.l.b16 %v722
    %v755 = vunpack.c.l.b16 %v723
    %v756 = vunpack.c.l.b16 %v724
    %v757 = vunpack.c.l.b16 %v725
    %v758 = vunpack.c.l.b16 %v726
    %v759 = vunpack.c.l.b16 %v727
    %v760 = vunpack.c.l.b16 %v728
    %v761 = vunpack.c.l.b16 %v729
    %v762 = vunpack.c.l.b16 %v730
    %v763 = vunpack.c.l.b16 %v731
    %v764 = vunpack.c.l.b16 %v732
    %v765 = vunpack.c.l.b16 %v733
    %v766 = vunpack.c.l.b16 %v734
    %v767 = vunpack.c.l.b16 %v735
    %v768 = vunpack.c.l.b16 %v736
    %v769 = vunpack.c.l.b16 %v737
    %v770 = vpack.c.b16 %v755, %v754
    %v771 = vpack.c.b16 %v757, %v756
    %v772 = vpack.c.b16 %v759, %v758
    %v773 = vpack.c.b16 %v761, %v760
    %v774 = vpack.c.b16 %v763, %v762
    %v775 = vpack.c.b16 %v765, %v764
    %v776 = vpack.c.b16 %v767, %v766
    %v777 = vpack.c.b16 %v769, %v768
    %786 = vmatprep.subr.bf16.mxu0 0
    %787 = vmatpush1.bf16.msra.mxu0 %v770
    %788 = vmatprep.subr.bf16.mxu0 0
    %789 = vmatpush1.bf16.msra.mxu0 %v771
    %790 = vmatprep.subr.bf16.mxu0 0
    %791 = vmatpush1.bf16.msra.mxu0 %v772
    %792 = vmatprep.subr.bf16.mxu0 0
    %793 = vmatpush1.bf16.msra.mxu0 %v773
    %794 = vmatprep.subr.bf16.mxu0 0
    %795 = vmatpush1.bf16.msra.mxu0 %v774
    %796 = vmatprep.subr.bf16.mxu0 0
    %797 = vmatpush1.bf16.msra.mxu0 %v775
    %798 = vmatprep.subr.bf16.mxu0 0
    %799 = vmatpush1.bf16.msra.mxu0 %v776
    %800 = vmatprep.subr.bf16.mxu0 0
    %801 = vmatpush1.bf16.msra.mxu0 %v777
    %802 = vmatprep.subr.bf16.mxu0 0
    %803 = vmatpush1.bf16.msra.mxu0 0
    %804 = vmatprep.subr.bf16.mxu0 0
    %805 = vmatpush1.bf16.msra.mxu0 0
    %806 = vmatprep.subr.bf16.mxu0 0
    %807 = vmatpush1.bf16.msra.mxu0 0
    %808 = vmatprep.subr.bf16.mxu0 0
    %809 = vmatpush1.bf16.msra.mxu0 0
    %810 = vmatprep.subr.bf16.mxu0 0
    %811 = vmatpush1.bf16.msra.mxu0 0
    %812 = vmatprep.subr.bf16.mxu0 0
    %813 = vmatpush1.bf16.msra.mxu0 0
    %814 = vmatprep.subr.bf16.mxu0 0
    %815 = vmatpush1.bf16.msra.mxu0 0
    %816 = vmatprep.subr.bf16.mxu0 0
    %817 = vmatpush1.bf16.msra.mxu0 0
    %818 = vmatprep.mubr.bf16.mxu0 0
    %819 = vmatmul.mubr.bf16.gmra.mrb[0].mxu0 %v720
    %v820 = vpop.f32.mrb[0].mxu0
    %v821 = vadd.f32 0.0, %v820
    %v822 = vpop.f32.mrb[0].mxu0
    %v823 = vpop.f32.mrb[0].mxu0
    %v824 = vpop.f32.mrb[0].mxu0
    %825 = vdwg.mxu0
    %v826 = vstv %s709
    %v827 = vmul.f32 %v721, %v826
    %v828 = vmul.f32 %v821, %v827
    %v829 = vmax.f32 %v828, 0.0
    %s830 = sld [smem:[#allocation2 + $0x2]]
    %v831 = vand.u32 2147483647, %v829
    %832 = vmax.xlane.f32.xlu0 %v831
    %v833 = vpop.xlane.xlu0 %832
    %v834 = vmax.f32 %v833, 1e-05
    %v835 = vrcp.pop %v834
    %v836 = vmul.f32 127.0, %v835
    %v837 = vmul.f32 %v829, %v836
    %v838 = vround.ne.pseudo %v837
    %v839 = vmax.f32 %v838, -128.0
    %v840 = vmin.f32 %v839, 127.0
    %v841 = vpack.c.bf16 %v840, %v840
    %v842 = vmul.f32 %v834, 0.007874016
    %v843 = vld [vmem:[#allocation10] sm:$0xf]
    %v844 = vld [vmem:[#allocation10 + $0x4] sm:$0xf]
    %v845 = vld [vmem:[#allocation10 + $0x8] sm:$0xf]
    %v846 = vld [vmem:[#allocation10 + $0xc] sm:$0xf]
    %v847 = vld [vmem:[#allocation10 + $0x10] sm:$0xf]
    %v848 = vld [vmem:[#allocation10 + $0x14] sm:$0xf]
    %v849 = vld [vmem:[#allocation10 + $0x18] sm:$0xf]
    %v850 = vld [vmem:[#allocation10 + $0x1c] sm:$0xf]
    %v851 = vld [vmem:[#allocation10 + $0x20] sm:$0xf]
    %v852 = vld [vmem:[#allocation10 + $0x24] sm:$0xf]
    %v853 = vld [vmem:[#allocation10 + $0x28] sm:$0xf]
    %v854 = vld [vmem:[#allocation10 + $0x2c] sm:$0xf]
    %v855 = vld [vmem:[#allocation10 + $0x30] sm:$0xf]
    %v856 = vld [vmem:[#allocation10 + $0x34] sm:$0xf]
    %v857 = vld [vmem:[#allocation10 + $0x38] sm:$0xf]
    %v858 = vld [vmem:[#allocation10 + $0x3c] sm:$0xf]
    %v875 = vunpack.c.l.b16 %v843
    %v876 = vunpack.c.l.b16 %v844
    %v877 = vunpack.c.l.b16 %v845
    %v878 = vunpack.c.l.b16 %v846
    %v879 = vunpack.c.l.b16 %v847
    %v880 = vunpack.c.l.b16 %v848
    %v881 = vunpack.c.l.b16 %v849
    %v882 = vunpack.c.l.b16 %v850
    %v883 = vunpack.c.l.b16 %v851
    %v884 = vunpack.c.l.b16 %v852
    %v885 = vunpack.c.l.b16 %v853
    %v886 = vunpack.c.l.b16 %v854
    %v887 = vunpack.c.l.b16 %v855
    %v888 = vunpack.c.l.b16 %v856
    %v889 = vunpack.c.l.b16 %v857
    %v890 = vunpack.c.l.b16 %v858
    %v891 = vpack.c.b16 %v876, %v875
    %v892 = vpack.c.b16 %v878, %v877
    %v893 = vpack.c.b16 %v880, %v879
    %v894 = vpack.c.b16 %v882, %v881
    %v895 = vpack.c.b16 %v884, %v883
    %v896 = vpack.c.b16 %v886, %v885
    %v897 = vpack.c.b16 %v888, %v887
    %v898 = vpack.c.b16 %v890, %v889
    %907 = vmatprep.subr.bf16.mxu0 0
    %908 = vmatpush1.bf16.msra.mxu0 %v891
    %909 = vmatprep.subr.bf16.mxu0 0
    %910 = vmatpush1.bf16.msra.mxu0 %v892
    %911 = vmatprep.subr.bf16.mxu0 0
    %912 = vmatpush1.bf16.msra.mxu0 %v893
    %913 = vmatprep.subr.bf16.mxu0 0
    %914 = vmatpush1.bf16.msra.mxu0 %v894
    %915 = vmatprep.subr.bf16.mxu0 0
    %916 = vmatpush1.bf16.msra.mxu0 %v895
    %917 = vmatprep.subr.bf16.mxu0 0
    %918 = vmatpush1.bf16.msra.mxu0 %v896
    %919 = vmatprep.subr.bf16.mxu0 0
    %920 = vmatpush1.bf16.msra.mxu0 %v897
    %921 = vmatprep.subr.bf16.mxu0 0
    %922 = vmatpush1.bf16.msra.mxu0 %v898
    %923 = vmatprep.subr.bf16.mxu0 0
    %924 = vmatpush1.bf16.msra.mxu0 0
    %925 = vmatprep.subr.bf16.mxu0 0
    %926 = vmatpush1.bf16.msra.mxu0 0
    %927 = vmatprep.subr.bf16.mxu0 0
    %928 = vmatpush1.bf16.msra.mxu0 0
    %929 = vmatprep.subr.bf16.mxu0 0
    %930 = vmatpush1.bf16.msra.mxu0 0
    %931 = vmatprep.subr.bf16.mxu0 0
    %932 = vmatpush1.bf16.msra.mxu0 0
    %933 = vmatprep.subr.bf16.mxu0 0
    %934 = vmatpush1.bf16.msra.mxu0 0
    %935 = vmatprep.subr.bf16.mxu0 0
    %936 = vmatpush1.bf16.msra.mxu0 0
    %937 = vmatprep.subr.bf16.mxu0 0
    %938 = vmatpush1.bf16.msra.mxu0 0
    %939 = vmatprep.mubr.bf16.mxu0 0
    %940 = vmatmul.mubr.bf16.gmra.mrb[0].mxu0 %v841
    %v941 = vpop.f32.mrb[0].mxu0
    %v942 = vadd.f32 0.0, %v941
    %v943 = vpop.f32.mrb[0].mxu0
    %v944 = vpop.f32.mrb[0].mxu0
    %v945 = vpop.f32.mrb[0].mxu0
    %946 = vdwg.mxu0
    %v947 = vstv %s830
    %v948 = vmul.f32 %v842, %v947
    %v949 = vmul.f32 %v942, %v948
    %950 = vst [vmem:[#allocation12] sm:$0xff] %v949
    // Predicated region
    $region42: #{tpu_custom_call.1} parent=1 // pred_check
      _
    $region43: #{tpu_custom_call.1} parent=1 // pred_check_branch
      %952 = sbr.rel (0) target = $region45
    $region44: #{tpu_custom_call.1} parent=1 // pred_region
      %s954 = ssub.s32 128, 128
      %955 = vsyncadd [#allocation4], %s954
      %s957 = sshll.u32 [#allocation12], 4
      %s958 = int_to_ptr.vmem [resolvable:$true] %s957
      %960 = dma.vmem_to_hbm [thread:$0]  %s958, 128, %s5, [#allocation4]
    $region45: #{tpu_custom_call.1} parent=1 // pred_fallthru
      _
    // Predicated region
    $region46: #{tpu_custom_call.1} parent=1 // pred_check
      _
    $region47: #{tpu_custom_call.1} parent=1 // pred_check_branch
      %962 = sbr.rel (0) target = $region49
    $region48: #{tpu_custom_call.1} parent=1 // pred_region
      %963 = dma.done [#allocation4], 128
    $region49: #{tpu_custom_call.1} parent=1 // pred_fallthru
      _
    %964 = vsyncpa [#allocation3], 1
    %965 = vsyncpa [#allocation8], 1
    %966 = vsyncpa [#allocation11], 1
    %967 = vsyncpa [#allocation4], 1
    %968 = vsyncpa [#allocation5], 1

</llo_original>
